<compile_context>
chip_gen: v5e
topology: v5e:2x2
jax: 0.10.0
libtpu: 0.0.40
codegen_flags: <defaults>
</compile_context>

<pallas_src>
import math

import jax
import jax.numpy as jnp
from jax import lax
from jax.experimental import pallas as pl
from jax.experimental.pallas import tpu as pltpu

_LANE = 128
_SUBLANE = 8

# lowbias32 hash constants, expressed as wrapping int32 values.
_HASH_M1 = 2146121005      # int32 view of 0x7FEB352D
_HASH_M2 = -2073254261     # int32 view of 0x846CA68B
_SEED_MIX = -1640531527    # int32 view of 0x9E3779B9 (golden-ratio constant)


# ----------------------------- planning helpers ----------------------------- #

def _pick_block_bytes():
    """Generation-aware row-tile size target (bytes per array per block)."""
    try:
        kind = jax.devices()[0].device_kind.lower()
    except Exception:
        kind = ""
    if "v7" in kind:
        return 8 << 20   # fast HBM: amortize ~0.35us/step overhead
    if "v6" in kind:
        return 4 << 20
    return 2 << 20       # v5e (16 MiB scoped VMEM default) / CPU interpret


def _plan_layout(n_elems, itemsize, block_bytes):
    """Choose a lane-dense 2-D view (rows, cols) of the flat tensor, a row-tile
    size, and the padded element count (multiple of cols*8)."""
    cols = _LANE
    for c in (2048, 1024, 512, 256, 128):
        if n_elems % c == 0 and (n_elems // c) % _SUBLANE == 0:
            cols = c
            break
    tile = cols * _SUBLANE
    n_pad = -(-n_elems // tile) * tile
    rows = n_pad // cols

    rows_per_block = (block_bytes // (cols * itemsize)) // _SUBLANE * _SUBLANE
    rows_per_block = max(_SUBLANE, min(rows, rows_per_block))
    # Ensure >= ~4 grid steps when the array is big enough (v7x megacore needs
    # multiple grid steps to shard across its 2 TensorCores).
    if rows // rows_per_block < 4:
        alt = (rows // 4) // _SUBLANE * _SUBLANE
        if alt >= _SUBLANE:
            rows_per_block = alt
    return rows, cols, rows_per_block, n_pad


def _compiler_params(block_bytes):
    # 2 arrays x 2 buffers x block + headroom; <= 40 MiB even at 8 MiB blocks,
    # which fits v7x's 64 MiB physical VMEM and v5e/v6e's 128 MiB.
    return pltpu.CompilerParams(
        dimension_semantics=("parallel",),
        vmem_limit_bytes=int(4 * block_bytes + (8 << 20)),
    )


def _to_slab(x, rows, cols, n_pad):
    flat = x.reshape(-1)
    n = flat.shape[0]
    if n_pad != n:
        flat = jnp.pad(flat, (0, n_pad - n))
    return flat.reshape(rows, cols)


def _from_slab(y2d, n, shape):
    flat = y2d.reshape(-1)
    if flat.shape[0] != n:
        flat = flat[:n]
    return flat.reshape(shape)


# ----------------------------- in-kernel hash RNG --------------------------- #

def _lsr32(h, k):
    """Logical shift-right for int32 (arithmetic shift + mask)."""
    return (h >> k) & jnp.int32((1 << (32 - k)) - 1)


def _uniform01_from_index(idx, key):
    """lowbias32 integer hash of (idx ^ key) -> float32 uniform in [0, 1)."""
    h = idx ^ key
    h = h ^ _lsr32(h, 16)
    h = h * jnp.int32(_HASH_M1)
    h = h ^ _lsr32(h, 15)
    h = h * jnp.int32(_HASH_M2)
    h = h ^ _lsr32(h, 16)
    bits = _lsr32(h, 9)                      # 23 random bits, non-negative
    return bits.astype(jnp.float32) * jnp.float32(1.0 / (1 << 23))


# ----------------------------- kernels -------------------------------------- #

def _encode_kernel(x_ref, z_ref):
    """z = x*2 - 1 (no dequantization)."""
    z_ref[...] = (x_ref[...].astype(jnp.float32) * 2.0 - 1.0).astype(z_ref.dtype)


def _encode_dequant_kernel(seed_ref, x_ref, z_ref):
    """z = 2*((255*x + u)/256) - 1 with u ~ U[0,1), constants folded:
       z = x*(255/128) + u*(1/128) - 1."""
    rb, cb = x_ref.shape
    x = x_ref[...].astype(jnp.float32)

    # Global element index of each slot in this tile (grid-invariant noise).
    row0 = pl.program_id(0) * rb
    r = lax.broadcasted_iota(jnp.int32, (rb, cb), 0)
    c = lax.broadcasted_iota(jnp.int32, (rb, cb), 1)
    idx = (r + row0) * jnp.int32(cb) + c
    key = seed_ref[0] * jnp.int32(_SEED_MIX)
    u = _uniform01_from_index(idx, key)

    z = x * jnp.float32(255.0 / 128.0) + (u * jnp.float32(1.0 / 128.0) - 1.0)
    z_ref[...] = z.astype(z_ref.dtype)


def _decode_kernel(z_ref, x_ref):
    """x = (z + 1) / 2."""
    x_ref[...] = ((z_ref[...].astype(jnp.float32) + 1.0) * 0.5).astype(x_ref.dtype)


# ----------------------------- wrappers -------------------------------------- #

def encoder_encode(x, *, seed: int = 0, dequantize: bool = False,
                   block_bytes: int | None = None):
    """Equivalent of Encoder.encode(x) with use_vae=False.

    x: floating-point array (batch first) with values in [0, 1].
    Returns (z, ldj) with ldj = D * log(2) per sample.
    """
    orig_shape = x.shape
    B = orig_shape[0]
    D = math.prod(orig_shape[1:])
    N = B * D
    if block_bytes is None:
        block_bytes = _pick_block_bytes()

    rows, cols, rpb, n_pad = _plan_layout(N, x.dtype.itemsize, block_bytes)
    x2d = _to_slab(x, rows, cols, n_pad)
    grid = (pl.cdiv(rows, rpb),)
    cparams = _compiler_params(block_bytes)

    if dequantize:
        seed_arr = jnp.asarray([seed], dtype=jnp.int32)
        z2d = pl.pallas_call(
            _encode_dequant_kernel,
            out_shape=jax.ShapeDtypeStruct((rows, cols), x.dtype),
            grid_spec=pltpu.PrefetchScalarGridSpec(
                num_scalar_prefetch=1,
                grid=grid,
                in_specs=[pl.BlockSpec((rpb, cols), lambda i, _seed: (i, 0))],
                out_specs=pl.BlockSpec((rpb, cols), lambda i, _seed: (i, 0)),
            ),
            compiler_params=cparams,
        )(seed_arr, x2d)
    else:
        z2d = pl.pallas_call(
            _encode_kernel,
            out_shape=jax.ShapeDtypeStruct((rows, cols), x.dtype),
            grid_spec=pl.GridSpec(
                grid=grid,
                in_specs=[pl.BlockSpec((rpb, cols), lambda i: (i, 0))],
                out_specs=pl.BlockSpec((rpb, cols), lambda i: (i, 0)),
            ),
            compiler_params=cparams,
        )(x2d)

    z = _from_slab(z2d, N, orig_shape)
    # ldj = logpx(=0) + sum over non-batch dims of log(2) = D*log(2); data
    # independent so computed directly (no in-kernel log / reduce / narrow store).
    ldj = jnp.full((B,), D * math.log(2.0), dtype=jnp.float32)
    return z, ldj


def encoder_decode(z, *, block_bytes: int | None = None):
    """Equivalent of Encoder.decode(z) with use_vae=False."""
    orig_shape = z.shape
    N = math.prod(orig_shape)
    if block_bytes is None:
        block_bytes = _pick_block_bytes()

    rows, cols, rpb, n_pad = _plan_layout(N, z.dtype.itemsize, block_bytes)
    z2d = _to_slab(z, rows, cols, n_pad)

    x2d = pl.pallas_call(
        _decode_kernel,
        out_shape=jax.ShapeDtypeStruct((rows, cols), z.dtype),
        grid_spec=pl.GridSpec(
            grid=(pl.cdiv(rows, rpb),),
            in_specs=[pl.BlockSpec((rpb, cols), lambda i: (i, 0))],
            out_specs=pl.BlockSpec((rpb, cols), lambda i: (i, 0)),
        ),
        compiler_params=_compiler_params(block_bytes),
    )(z2d)

    return _from_slab(x2d, N, orig_shape)


# ----------------------------- self-test ------------------------------------ #

if __name__ == "__main__":
    key = jax.random.PRNGKey(0)

    # Small shape consistent with the module config.
    B, C, H, W = 2, 4, 16, 16
    x = jax.random.uniform(key, (B, C, H, W), dtype=jnp.float32)  # in [0, 1)

    # encode (dequantize=False path -- deterministic reference check)
    z, ldj = encoder_encode(x, dequantize=False)
    z = jax.block_until_ready(z)
    ldj = jax.block_until_ready(ldj)

    z_ref = x * 2.0 - 1.0
    ldj_ref = jnp.full((B,), C * H * W * math.log(2.0), dtype=jnp.float32)
    assert jnp.allclose(z, z_ref, atol=1e-6), "z mismatch"
    assert jnp.allclose(ldj, ldj_ref, rtol=1e-6), "ldj mismatch"

    # decode round-trip
    x_rec = jax.block_until_ready(encoder_decode(z))
    assert jnp.allclose(x_rec, x, atol=1e-6), "decode mismatch"

    # dequantize=True path: z' = 2*((255x+u)/256) - 1 with u in [0,1),
    # so |z' - z| <= 1/128 and z' in [-1, 1).
    z_dq, ldj_dq = encoder_encode(x, seed=42, dequantize=True)
    z_dq = jax.block_until_ready(z_dq)
    assert z_dq.shape == (B, C, H, W)
    assert bool(jnp.all(z_dq >= -1.0)) and bool(jnp.all(z_dq <= 1.0)), "dequant range"
    assert float(jnp.max(jnp.abs(z_dq - z_ref))) <= 1.0 / 128.0 + 1e-5, "dequant bound"
    assert jnp.allclose(ldj_dq, ldj_ref, rtol=1e-6), "dequant ldj mismatch"
    # determinism: same seed -> same noise
    z_dq2, _ = encoder_encode(x, seed=42, dequantize=True)
    assert jnp.allclose(z_dq, jax.block_until_ready(z_dq2)), "dequant not deterministic"

    # Larger shape with a small block target to exercise the multi-tile
    # pipelined grid (grid > 1).
    B2, C2, H2, W2 = 8, 3, 64, 64
    x2 = jax.random.uniform(jax.random.PRNGKey(1), (B2, C2, H2, W2),
                            dtype=jnp.float32)
    z2, _ = encoder_encode(x2, dequantize=False, block_bytes=64 * 1024)
    z2 = jax.block_until_ready(z2)
    assert jnp.allclose(z2, x2 * 2.0 - 1.0, atol=1e-6), "tiled z mismatch"
    x2_rec = jax.block_until_ready(encoder_decode(z2, block_bytes=64 * 1024))
    assert jnp.allclose(x2_rec, x2, atol=1e-6), "tiled decode mismatch"

    # Non-(8*128)-divisible shape exercises the padded-slab path.
    x3 = jax.random.uniform(jax.random.PRNGKey(2), (2, 3, 5, 7), dtype=jnp.float32)
    z3, ldj3 = encoder_encode(x3, dequantize=False)
    z3 = jax.block_until_ready(z3)
    assert jnp.allclose(z3, x3 * 2.0 - 1.0, atol=1e-6), "padded z mismatch"
    assert jnp.allclose(ldj3, jnp.full((2,), 3 * 5 * 7 * math.log(2.0)),
                        rtol=1e-6), "padded ldj mismatch"
    x3_rec = jax.block_until_ready(encoder_decode(z3))
    assert jnp.allclose(x3_rec, x3, atol=1e-6), "padded decode mismatch"

    print("KERNEL_OK")
</pallas_src>

<mosaic_0001>
module attributes {stable_mosaic.version = 11 : i64} {
  func.func @_encode_kernel(%arg0: i32, %arg1: memref<8x256xf32, #tpu.memory_space<vmem>>, %arg2: memref<8x256xf32, #tpu.memory_space<vmem>>) attributes {dimension_semantics = [#tpu.dimension_semantics<parallel>], iteration_bounds = array<i64: 1>, scalar_prefetch = 0 : i64, scratch_operands = 0 : i64, tpu.core_type = #tpu.core_type<tc>, window_params = [{transform_indices = @transform_0, window_bounds = array<i64: 8, 256>}, {transform_indices = @transform_1, window_bounds = array<i64: 8, 256>}]} {
    %c0 = arith.constant 0 : index
    %c0_0 = arith.constant 0 : index
    %0 = vector.load %arg1[%c0, %c0_0] : memref<8x256xf32, #tpu.memory_space<vmem>>, vector<8x256xf32>
    %cst = arith.constant 2.000000e+00 : f32
    %1 = vector.broadcast %cst : f32 to vector<8x256xf32>
    %2 = arith.mulf %0, %1 : vector<8x256xf32>
    %cst_1 = arith.constant 1.000000e+00 : f32
    %3 = vector.broadcast %cst_1 : f32 to vector<8x256xf32>
    %4 = arith.subf %2, %3 : vector<8x256xf32>
    %c0_2 = arith.constant 0 : index
    %c0_3 = arith.constant 0 : index
    %5 = vector.load %arg2[%c0_2, %c0_3] : memref<8x256xf32, #tpu.memory_space<vmem>>, vector<8x256xf32>
    tpu.vector_store %arg2[%c0_2, %c0_3], %4 {strides = array<i32>} : memref<8x256xf32, #tpu.memory_space<vmem>>, vector<8x256xf32>,
    return
  }
  func.func @transform_0(%arg0: i32) -> (i32, i32) {
    %c0_i32 = arith.constant 0 : i32
    %c0_i32_0 = arith.constant 0 : i32
    return %arg0, %c0_i32 : i32, i32
  }
  func.func @transform_1(%arg0: i32) -> (i32, i32) {
    %c0_i32 = arith.constant 0 : i32
    %c0_i32_0 = arith.constant 0 : i32
    return %arg0, %c0_i32 : i32, i32
  }
}

</mosaic_0001>

<llo_original>
// kernel: tpu_custom_call.1
$region0: #{tpu_custom_call.1}
  #allocation0 [shape = 'u32[]', space=smem, size = 0x4, offset = 0x4, fixed_abs, tag = 'smem constant byte address 0x4 - core index']
  #allocation1 [shape = 'u32[72,128]{1,0:T(1,128)}', space=vmem, size = 0x9000, scoped, tag = 'internal scratch']
  %s0 = inlined_call_operand.hbm [shape: f32[8,256], index: 0, kind: input, shape index: {}]
  %s1 = inlined_call_operand.hbm [shape: f32[8,256], index: 1, kind: output, shape index: {}]
  %s2 = sld [smem:[#allocation0]]
  $region18: #{tpu_custom_call.1} parent=0
    _
  %s4 = ssub.s32 1, %s2
  %s5 = scalar_select 0, %s4, %s2
  $region1: #{tpu_custom_call.1} parent=0
    #allocation2 [shape = 'u8[8192]{0}', space=vmem, size = 0x2000, scoped, tag = 'input window, operand 0, single buffered']
    #allocation3 [shape = 's32[1]{0}', space=sflag, size = 0x4, scoped, tag = 'scoped memory for tpu_custom_call.1']
    #allocation4 [shape = 's32[1]{0}', space=sflag, size = 0x4, scoped, tag = 'scoped memory for tpu_custom_call.1']
    #allocation5 [shape = 'u8[8192]{0}', space=vmem, size = 0x2000, scoped, tag = 'output window, operand 0, single buffered']
    %6 = vsyncpa [#allocation3], 0
    %7 = vsyncpa [#allocation4], 0
    // Predicated region
    $region2: #{tpu_custom_call.1} parent=1 // pred_check
      _
    $region3: #{tpu_custom_call.1} parent=1 // pred_check_branch
      %9 = sbr.rel (0) target = $region5
    $region4: #{tpu_custom_call.1} parent=1 // pred_region
      %11 = vsyncadd [#allocation3], 0
      %s13 = sshll.u32 %s0, 4
      %s14 = int_to_ptr.hbm [resolvable:$true] %s13
      %s15 = sshll.u32 [#allocation2], 4
      %s16 = int_to_ptr.vmem [resolvable:$true] %s15
      %18 = dma.hbm_to_vmem [thread:$0]  %s14, 256, %s16, [#allocation3]
    $region5: #{tpu_custom_call.1} parent=1 // pred_fallthru
      _
    // Predicated region
    $region6: #{tpu_custom_call.1} parent=1 // pred_check
      _
    $region7: #{tpu_custom_call.1} parent=1 // pred_check_branch
      %20 = sbr.rel (0) target = $region9
    $region8: #{tpu_custom_call.1} parent=1 // pred_region
      %22 = dma.done [#allocation3], 256
    $region9: #{tpu_custom_call.1} parent=1 // pred_fallthru
      _
    %v23 = vld [vmem:[#allocation2] sm:$0xff]
    %v24 = vld [vmem:[#allocation2 + $0x8] sm:$0xff]
    %v25 = vmul.f32 %v23, 2.0
    %v26 = vmul.f32 %v24, 2.0
    %v27 = vsub.f32 %v25, 1.0
    %v28 = vsub.f32 %v26, 1.0
    %29 = vst [vmem:[#allocation5] sm:$0xff] %v27
    %30 = vst [vmem:[#allocation5 + $0x8] sm:$0xff] %v28
    // Predicated region
    $region10: #{tpu_custom_call.1} parent=1 // pred_check
      _
    $region11: #{tpu_custom_call.1} parent=1 // pred_check_branch
      %32 = sbr.rel (0) target = $region13
    $region12: #{tpu_custom_call.1} parent=1 // pred_region
      %34 = vsyncadd [#allocation4], 0
      %s36 = sshll.u32 [#allocation5], 4
      %s37 = int_to_ptr.vmem [resolvable:$true] %s36
      %s38 = sshll.u32 %s1, 4
      %s39 = int_to_ptr.hbm [resolvable:$true] %s38
      %41 = dma.vmem_to_hbm [thread:$0]  %s37, 256, %s39, [#allocation4]
    $region13: #{tpu_custom_call.1} parent=1 // pred_fallthru
      _
    // Predicated region
    $region14: #{tpu_custom_call.1} parent=1 // pred_check
      _
    $region15: #{tpu_custom_call.1} parent=1 // pred_check_branch
      %43 = sbr.rel (0) target = $region17
    $region16: #{tpu_custom_call.1} parent=1 // pred_region
      %45 = dma.done [#allocation4], 256
    $region17: #{tpu_custom_call.1} parent=1 // pred_fallthru
      _
    %46 = vsyncpa [#allocation3], 1
    %47 = vsyncpa [#allocation4], 1

</llo_original>
